<compile_context>
chip_gen: v7x
topology: tpu7x:2x2x1
jax: 0.10.0
libtpu: 0.0.40
codegen_flags: <defaults>
</compile_context>

<pallas_src>
import functools
import math

import jax
import jax.numpy as jnp
from jax.experimental import pallas as pl
from jax.experimental.pallas import tpu as pltpu


def _linear_schedule_kernel(count_ref, out_ref, *, a, slope, lo, hi):
    # out = a - slope * clip(count, lo, hi); constants are folded Python floats.
    c = count_ref[...].astype(jnp.float32)
    c = jnp.minimum(jnp.maximum(c, jnp.float32(lo)), jnp.float32(hi))
    out_ref[...] = (jnp.float32(a) - jnp.float32(slope) * c).astype(out_ref.dtype)


_SMALL_BYTES = 64 * 1024        # below this a single whole-array block is optimal
_MIN_BLOCK_BYTES = 256 * 1024   # don't shrink blocks below this (per-step overhead regime)
_MIN_GRID_STEPS = 8             # >= 4 pipelined steps per TensorCore on v7x megacore


def _target_block_bytes():
    """Generation-aware per-buffer byte target (v7x: ~4 MiB, v5e/v6e: ~8 MiB)."""
    try:
        vmem = int(pltpu.get_tpu_info().vmem_capacity_bytes)
    except Exception:
        vmem = 0
    # 128 MiB VMEM (v5e/v6e) -> 8 MiB/buffer; 64 MiB per TC (v7x) / unknown -> 4 MiB.
    return 8 * 1024 * 1024 if vmem >= 96 * 1024 * 1024 else 4 * 1024 * 1024


def _lane_dense_2d(shape):
    """Pick a lane-dense 2-D view of an elementwise operand, if one exists."""
    total = max(1, math.prod(shape))
    if len(shape) == 2 and shape[0] % 8 == 0 and shape[1] % 128 == 0 and shape[1] >= 128:
        return shape  # already sublane/lane aligned, keep as-is (reshape is a no-op)
    for w in (8192, 4096, 2048, 1024, 512, 256, 128):
        if total % (8 * w) == 0:
            return (total // w, w)
    if len(shape) >= 2:
        return (math.prod(shape[:-1]), shape[-1])
    return (1, total)


def linear_schedule(count, *, init_value, end_value, transition_steps,
                    transition_begin, out_dtype=jnp.float32):
    """Applies the linear schedule elementwise to `count` (any shape)."""
    orig_shape = count.shape

    init_value = float(init_value)
    end_value = float(end_value)
    begin = float(transition_begin)
    steps = float(transition_steps)

    if steps <= 0.0:
        # Degenerate schedule: the reference divides by zero (inf/nan); follow
        # optax semantics and hold the initial value.
        return jnp.full(orig_shape, init_value, dtype=out_dtype)

    slope = (init_value - end_value) / steps
    a = init_value + slope * begin
    lo = begin
    hi = begin + steps

    kernel = functools.partial(
        _linear_schedule_kernel, a=a, slope=slope, lo=lo, hi=hi)

    # Lane-dense 2-D slab view (free, metadata-only reshape of a contiguous array).
    shape2d = _lane_dense_2d(orig_shape)
    rows, cols = shape2d
    count2d = count.reshape(shape2d)

    in_itemsize = jnp.dtype(count.dtype).itemsize
    out_itemsize = jnp.dtype(out_dtype).itemsize

    if rows * cols * in_itemsize <= _SMALL_BYTES or rows < 8:
        # Whole-array single block: always layout-legal, per-step overhead
        # dominates at this size anyway.
        block = (rows, cols)
        grid = (1,)
        index_map = lambda i: (0, 0)
    else:
        # Row-tiled, full-cols blocks (full-dim cols are layout-legal for any
        # cols; 8-multiple row blocks + pl.cdiv handle ragged last tiles).
        bytes_per_row = cols * max(in_itemsize, out_itemsize)
        target = _target_block_bytes()
        tr = max(8, (target // bytes_per_row // 8) * 8)
        tr = min(tr, rows)
        grid_n = pl.cdiv(rows, tr)
        # Ensure enough grid steps for DMA/compute overlap (>= 4 per v7x core),
        # but never shrink blocks below ~256 KiB.
        while (grid_n < _MIN_GRID_STEPS and tr > 8
               and (tr // 2) * bytes_per_row >= _MIN_BLOCK_BYTES):
            tr = max(8, ((tr // 2) // 8) * 8)
            grid_n = pl.cdiv(rows, tr)
        block = (tr, cols)
        grid = (grid_n,)
        index_map = lambda i: (i, 0)

    # Explicit VMEM budget: double-buffered input + output blocks + headroom.
    in_block_bytes = block[0] * block[1] * in_itemsize
    out_block_bytes = block[0] * block[1] * out_itemsize
    vmem_limit = int(2 * (in_block_bytes + out_block_bytes) + 2 * 1024 * 1024)
    vmem_limit = max(vmem_limit, 16 * 1024 * 1024)

    cost = pl.CostEstimate(
        flops=2 * rows * cols,
        transcendentals=0,
        bytes_accessed=rows * cols * (in_itemsize + out_itemsize))

    out2d = pl.pallas_call(
        kernel,
        out_shape=jax.ShapeDtypeStruct((rows, cols), out_dtype),
        grid_spec=pltpu.PrefetchScalarGridSpec(
            num_scalar_prefetch=0,
            grid=grid,
            in_specs=[pl.BlockSpec(block, index_map)],
            out_specs=pl.BlockSpec(block, index_map),
        ),
        compiler_params=pltpu.CompilerParams(
            dimension_semantics=("parallel",),
            vmem_limit_bytes=vmem_limit),
        cost_estimate=cost,
    )(count2d)

    return out2d.reshape(orig_shape)


if __name__ == "__main__":
    # Schedule hyper-parameters (the module's __init__ args).
    init_value = 1.0
    end_value = 0.1
    transition_steps = 100
    transition_begin = 10

    def ref_fn(c):
        cc = jnp.clip(c.astype(jnp.float32) - transition_begin, 0,
                      transition_steps)
        frac = 1.0 - cc / transition_steps
        return (init_value - end_value) * frac + end_value

    run = functools.partial(
        linear_schedule,
        init_value=init_value, end_value=end_value,
        transition_steps=transition_steps, transition_begin=transition_begin)

    key = jax.random.PRNGKey(0)
    k1, k2, k3, k4 = jax.random.split(key, 4)

    # 1) Small single-block path (the original demo shape).
    c_small = jax.random.randint(k1, (8, 128), minval=0, maxval=200, dtype=jnp.int32)
    o_small = jax.block_until_ready(run(c_small))
    assert o_small.dtype == jnp.float32
    assert jnp.allclose(o_small, ref_fn(c_small), atol=1e-5, rtol=1e-5)

    # 2) Aligned 2-D tiled path (grid split so v7x cores can pipeline).
    c_big = jax.random.randint(k2, (1024, 256), minval=0, maxval=200, dtype=jnp.int32)
    o_big = jax.block_until_ready(run(c_big))
    assert jnp.allclose(o_big, ref_fn(c_big), atol=1e-5, rtol=1e-5)

    # 3) Ragged rows / non-128-multiple cols: tiled full-cols blocks with cdiv masking.
    c_rag = jax.random.randint(k3, (1000, 320), minval=0, maxval=200, dtype=jnp.int32)
    o_rag = jax.block_until_ready(run(c_rag))
    assert jnp.allclose(o_rag, ref_fn(c_rag), atol=1e-5, rtol=1e-5)

    # 4) 1-D input -> lane-dense slab reshape path.
    c_1d = jax.random.randint(k4, (24576,), minval=0, maxval=200, dtype=jnp.int32)
    o_1d = jax.block_until_ready(run(c_1d))
    assert o_1d.shape == c_1d.shape
    assert jnp.allclose(o_1d, ref_fn(c_1d), atol=1e-5, rtol=1e-5)

    print("KERNEL_OK")
</pallas_src>

<mosaic_0001>
module attributes {stable_mosaic.version = 11 : i64} {
  func.func @_linear_schedule_kernel(%arg0: i32, %arg1: memref<8x128xi32, #tpu.memory_space<vmem>>, %arg2: memref<8x128xf32, #tpu.memory_space<vmem>>) attributes {dimension_semantics = [#tpu.dimension_semantics<parallel>], iteration_bounds = array<i64: 1>, scalar_prefetch = 0 : i64, scratch_operands = 0 : i64, tpu.core_type = #tpu.core_type<tc>, window_params = [{pipeline_mode = #tpu.pipeline_mode<synchronous>, transform_indices = @transform_0, window_bounds = array<i64: 8, 128>}, {pipeline_mode = #tpu.pipeline_mode<synchronous>, transform_indices = @transform_1, window_bounds = array<i64: 8, 128>}]} {
    %c0 = arith.constant 0 : index
    %c0_0 = arith.constant 0 : index
    %0 = vector.load %arg1[%c0, %c0_0] : memref<8x128xi32, #tpu.memory_space<vmem>>, vector<8x128xi32>
    %1 = arith.sitofp %0 : vector<8x128xi32> to vector<8x128xf32>
    %cst = arith.constant 1.000000e+01 : f32
    %2 = vector.broadcast %cst : f32 to vector<8x128xf32>
    %3 = arith.maximumf %1, %2 : vector<8x128xf32>
    %cst_1 = arith.constant 1.100000e+02 : f32
    %4 = vector.broadcast %cst_1 : f32 to vector<8x128xf32>
    %5 = arith.minimumf %3, %4 : vector<8x128xf32>
    %cst_2 = arith.constant 0.00899999961 : f32
    %6 = vector.broadcast %cst_2 : f32 to vector<8x128xf32>
    %7 = arith.mulf %6, %5 : vector<8x128xf32>
    %cst_3 = arith.constant 1.090000e+00 : f32
    %8 = vector.broadcast %cst_3 : f32 to vector<8x128xf32>
    %9 = arith.subf %8, %7 : vector<8x128xf32>
    %c0_4 = arith.constant 0 : index
    %c0_5 = arith.constant 0 : index
    %10 = vector.load %arg2[%c0_4, %c0_5] : memref<8x128xf32, #tpu.memory_space<vmem>>, vector<8x128xf32>
    tpu.vector_store %arg2[%c0_4, %c0_5], %9 {strides = array<i32>} : memref<8x128xf32, #tpu.memory_space<vmem>>, vector<8x128xf32>,
    return
  }
  func.func @transform_0(%arg0: i32) -> (i32, i32) {
    %c0_i32 = arith.constant 0 : i32
    %c0_i32_0 = arith.constant 0 : i32
    %c0_i32_1 = arith.constant 0 : i32
    return %c0_i32, %c0_i32_0 : i32, i32
  }
  func.func @transform_1(%arg0: i32) -> (i32, i32) {
    %c0_i32 = arith.constant 0 : i32
    %c0_i32_0 = arith.constant 0 : i32
    %c0_i32_1 = arith.constant 0 : i32
    return %c0_i32, %c0_i32_0 : i32, i32
  }
}

</mosaic_0001>

<llo_original>
// kernel: tpu_custom_call.1
$region0: #{tpu_custom_call.1}
  #allocation0 [shape = 'u32[]', space=smem, size = 0x4, offset = 0x4, fixed_abs, tag = 'smem constant byte address 0x4 - core index']
  #allocation1 [shape = 'u32[144,128]{1,0:T(1,128)}', space=vmem, size = 0x12000, scoped, tag = 'internal scratch']
  %s0 = inlined_call_operand.hbm [shape: s32[8,128], index: 0, kind: input, shape index: {}]
  %s1 = inlined_call_operand.hbm [shape: f32[8,128], index: 1, kind: output, shape index: {}]
  %s2 = sld [smem:[#allocation0]]
  $region18: #{tpu_custom_call.1} parent=0
    _
  %s4 = ssub.s32 1, %s2
  %s5 = scalar_select 0, %s4, %s2
  $region1: #{tpu_custom_call.1} parent=0
    #allocation2 [shape = 'u8[4096]{0}', space=vmem, size = 0x1000, scoped, tag = 'input window, operand 0, single buffered']
    #allocation3 [shape = 's32[1]{0}', space=sflag, size = 0x4, scoped, tag = 'scoped memory for tpu_custom_call.1']
    #allocation4 [shape = 's32[1]{0}', space=sflag, size = 0x4, scoped, tag = 'scoped memory for tpu_custom_call.1']
    #allocation5 [shape = 'u8[4096]{0}', space=vmem, size = 0x1000, scoped, tag = 'output window, operand 0, single buffered']
    %6 = vsyncpa [#allocation3], 0
    %7 = vsyncpa [#allocation4], 0
    // Predicated region
    $region2: #{tpu_custom_call.1} parent=1 // pred_check
      _
    $region3: #{tpu_custom_call.1} parent=1 // pred_check_branch
      %9 = sbr.rel (0) target = $region5
    $region4: #{tpu_custom_call.1} parent=1 // pred_region
      %s11 = ssub.s32 128, 128
      %12 = vsyncadd [#allocation3], %s11
      %s14 = sshll.u32 [#allocation2], 4
      %s15 = int_to_ptr.vmem [resolvable:$true] %s14
      %17 = dma.hbm_to_vmem [thread:$0]  %s0, 128, %s15, [#allocation3]
    $region5: #{tpu_custom_call.1} parent=1 // pred_fallthru
      _
    // Predicated region
    $region6: #{tpu_custom_call.1} parent=1 // pred_check
      _
    $region7: #{tpu_custom_call.1} parent=1 // pred_check_branch
      %19 = sbr.rel (0) target = $region9
    $region8: #{tpu_custom_call.1} parent=1 // pred_region
      %20 = dma.done [#allocation3], 128
    $region9: #{tpu_custom_call.1} parent=1 // pred_fallthru
      _
    %v21 = vld [vmem:[#allocation2] sm:$0xff]
    %v22 = vcvt.s32.f32 %v21
    %v23 = vmax.f32 %v22, 10.0
    %v24 = vmin.f32 %v23, 110.0
    %v25 = vmul.f32 %v24, 0.009
    %v26 = vsub.f32 1.09, %v25
    %27 = vst [vmem:[#allocation5] sm:$0xff] %v26
    // Predicated region
    $region10: #{tpu_custom_call.1} parent=1 // pred_check
      _
    $region11: #{tpu_custom_call.1} parent=1 // pred_check_branch
      %29 = sbr.rel (0) target = $region13
    $region12: #{tpu_custom_call.1} parent=1 // pred_region
      %s31 = ssub.s32 128, 128
      %32 = vsyncadd [#allocation4], %s31
      %s34 = sshll.u32 [#allocation5], 4
      %s35 = int_to_ptr.vmem [resolvable:$true] %s34
      %37 = dma.vmem_to_hbm [thread:$0]  %s35, 128, %s1, [#allocation4]
    $region13: #{tpu_custom_call.1} parent=1 // pred_fallthru
      _
    // Predicated region
    $region14: #{tpu_custom_call.1} parent=1 // pred_check
      _
    $region15: #{tpu_custom_call.1} parent=1 // pred_check_branch
      %39 = sbr.rel (0) target = $region17
    $region16: #{tpu_custom_call.1} parent=1 // pred_region
      %40 = dma.done [#allocation4], 128
    $region17: #{tpu_custom_call.1} parent=1 // pred_fallthru
      _
    %41 = vsyncpa [#allocation3], 1
    %42 = vsyncpa [#allocation4], 1

</llo_original>
